<compile_context>
chip_gen: v7x
topology: tpu7x:2x2x1
jax: 0.10.0
libtpu: 0.0.40
codegen_flags: <defaults>
</compile_context>

<pallas_src>
import numpy as np
import jax
import jax.numpy as jnp
from jax.experimental import pallas as pl
from jax.experimental.pallas import tpu as pltpu


_MAX_TILE_S = 4096          # 4096 * 128 lanes * 4 B = 2 MiB per f32 block


def _ego_replace_kernel(starts_ref, curr_ref, hist_ref, out_ref):
    """Copy one (1, TILE_S, LANE) ego-row block of feat_curr into the output.

    hist_ref is only an operand because its buffer is aliased to the output
    (in-place ego-row replacement); its values are never needed here.
    starts_ref is consumed by the index_maps, not by the body.
    """
    del starts_ref, hist_ref
    out_ref[...] = curr_ref[...]


def _lane_view(f):
    """Lane-dense (S, LANE) factorization of the per-row feature size F."""
    if f % 128 == 0:
        return f // 128, 128
    # TODO(synk): pad F up to a multiple of 128 instead of this un-tiled
    # fallback (only hit for odd shapes; costs masked stores / one big block).
    return 1, f


def _ego_replace_impl(starts, feat_curr, feat_hist):
    """out = feat_hist with rows starts[b] overwritten by feat_curr[starts[b]].

    Only the B ego rows move through the kernel; the remaining N-B rows come
    for free from aliasing feat_hist's buffer to the output.
    """
    N, C, H, W = feat_curr.shape
    F = C * H * W
    B = starts.shape[0]
    S, LANE = _lane_view(F)
    TILE_S = S if S <= _MAX_TILE_S else _MAX_TILE_S
    grid_s = pl.cdiv(S, TILE_S)

    curr3 = feat_curr.reshape(N, S, LANE)   # free view of contiguous NCHW
    hist3 = feat_hist.reshape(N, S, LANE)

    itemsize = np.dtype(feat_curr.dtype).itemsize
    blk_bytes = TILE_S * LANE * itemsize
    # 3 blocked streams (curr in, hist in, out) x 2 pipeline buffers + slack.
    vmem_limit = int(max(4 * 1024 * 1024, 8 * blk_bytes))
    cost = pl.CostEstimate(flops=0, transcendentals=0,
                           bytes_accessed=int(3 * B * F * itemsize))

    def _blk():
        # index_map receives (grid b, grid s, *scalar-prefetch refs).
        return pl.BlockSpec((1, TILE_S, LANE), lambda b, s, st: (st[b], s, 0))

    out3 = pl.pallas_call(
        _ego_replace_kernel,
        out_shape=jax.ShapeDtypeStruct((N, S, LANE), feat_curr.dtype),
        grid_spec=pltpu.PrefetchScalarGridSpec(
            num_scalar_prefetch=1,
            grid=(B, grid_s),
            in_specs=[_blk(), _blk()],
            out_specs=_blk(),
        ),
        # Flat operand index (incl. scalar prefetch): starts=0, curr3=1, hist3=2.
        input_output_aliases={2: 0},
        compiler_params=pltpu.CompilerParams(
            dimension_semantics=("parallel", "parallel"),
            vmem_limit_bytes=vmem_limit,
        ),
        cost_estimate=cost,
    )(starts, curr3, hist3)
    return out3.reshape(N, C, H, W)


_ego_replace = jax.jit(_ego_replace_impl)
_ego_replace_donate = jax.jit(_ego_replace_impl, donate_argnums=(2,))


def how2comm_preprocess_forward(fused_curr, fused_history, record_len, *,
                                delay, flow_flag=False, donate_history=False):
    """JAX/Pallas equivalent of How2commPreprocess.forward (flow_flag=False).

    fused_curr    : (vox_curr, feat_curr, det_curr), each (N, C, H, W)
    fused_history : (vox_hist, feat_hist, det_hist), each (N, C, H, W)
    record_len    : host int array (B,), sum == N (must be concrete, not traced)
    delay         : 0 (current frame) or 1 (history frame), host int
    donate_history: if True, feat_hist's device buffer is donated so the output
                    aliases it in place (largest HBM-traffic saving); the caller
                    must not reuse feat_hist afterwards.
    Returns (feat_final (N, C, H, W), offset_loss (1,) float32).
    """
    if flow_flag:
        # TODO(synk): FlowGenerator / grid_sample warp path not implementable
        # (FlowGenerator, Communication classes are not defined in the spec).
        raise NotImplementedError("flow_flag=True path not implemented")
    if delay not in (0, 1):
        raise ValueError("delay must be 0 (current frame) or 1 (history frame)")

    _, feat_curr, _ = fused_curr           # vox / det never reach the output here
    _, feat_hist, _ = fused_history
    N = feat_curr.shape[0]
    record_len = np.asarray(record_len)
    if int(record_len.sum()) != N:
        raise ValueError("record_len must sum to the number of agent rows N")

    offset_loss = jnp.zeros((1,), dtype=jnp.float32)

    if delay == 0:
        # concat([curr[:1], curr[1:]]) per scene == feat_curr: zero data movement.
        return feat_curr, offset_loss

    # delay == 1: ego rows come from the current frame, everything else from
    # the history frame.  Scene start offsets are host-known -> scalar prefetch.
    starts = np.concatenate([[0], np.cumsum(record_len)[:-1]]).astype(np.int32)
    impl = _ego_replace_donate if donate_history else _ego_replace
    feat_final = impl(jnp.asarray(starts), feat_curr, feat_hist)
    return feat_final, offset_loss


if __name__ == "__main__":
    import warnings
    warnings.filterwarnings("ignore", message="Some donated buffers.*")

    # Small deterministic example:
    #   2 scenes with record_len = [2, 3] -> N = 5 agents, C=8, H=W=16.
    key = jax.random.PRNGKey(0)
    record_len = np.array([2, 3], dtype=np.int32)
    N, C, H, W = int(record_len.sum()), 8, 16, 16

    ks = jax.random.split(key, 6)
    vox_curr = jax.random.normal(ks[0], (N, C, H, W), dtype=jnp.float32)
    feat_curr = jax.random.normal(ks[1], (N, C, H, W), dtype=jnp.float32)
    det_curr = jax.random.normal(ks[2], (N, C, H, W), dtype=jnp.float32)
    vox_hist = jax.random.normal(ks[3], (N, C, H, W), dtype=jnp.float32)
    feat_hist = jax.random.normal(ks[4], (N, C, H, W), dtype=jnp.float32)
    det_hist = jax.random.normal(ks[5], (N, C, H, W), dtype=jnp.float32)

    # Host copies for the reference check (taken before any buffer donation).
    fc = np.asarray(feat_curr)
    fh = np.asarray(feat_hist)

    fused_curr = (vox_curr, feat_curr, det_curr)
    fused_hist = (vox_hist, feat_hist, det_hist)

    # ---- delay == 0 fast path (no kernel; output is exactly feat_curr) ----
    out0, loss0 = how2comm_preprocess_forward(
        fused_curr, fused_hist, record_len, delay=0, flow_flag=False)
    out0 = jax.block_until_ready(out0)
    np.testing.assert_allclose(np.asarray(out0), fc, rtol=0, atol=0)
    assert loss0.shape == (1,) and float(loss0[0]) == 0.0

    # ---- delay == 1 kernel path (history buffer donated / aliased) ----
    out1, loss1 = how2comm_preprocess_forward(
        fused_curr, fused_hist, record_len, delay=1, flow_flag=False,
        donate_history=True)
    out1 = jax.block_until_ready(out1)
    loss1 = jax.block_until_ready(loss1)

    # Pure-numpy reference of the forward semantics.
    starts = np.concatenate([[0], np.cumsum(record_len)[:-1]])
    expected_parts = []
    for bs, s in enumerate(starts):
        e = s + int(record_len[bs])
        expected_parts.append(np.concatenate([fc[s:s + 1], fh[s + 1:e]], axis=0))
    expected = np.concatenate(expected_parts, axis=0)

    np.testing.assert_allclose(np.asarray(out1), expected, rtol=0, atol=0)
    assert loss1.shape == (1,) and float(loss1[0]) == 0.0

    print("KERNEL_OK")
</pallas_src>

<mosaic_0001>
module attributes {stable_mosaic.version = 11 : i64} {
  func.func @_ego_replace_kernel(%arg0: i32, %arg1: i32, %arg2: memref<2xi32, #tpu.memory_space<smem>>, %arg3: memref<1x16x128xf32, #tpu.memory_space<vmem>>, %arg4: memref<1x16x128xf32, #tpu.memory_space<vmem>>, %arg5: memref<1x16x128xf32, #tpu.memory_space<vmem>>) attributes {dimension_semantics = [#tpu.dimension_semantics<parallel>, #tpu.dimension_semantics<parallel>], iteration_bounds = array<i64: 2, 1>, scalar_prefetch = 1 : i64, scratch_operands = 0 : i64, tpu.core_type = #tpu.core_type<tc>, window_params = [{transform_indices = @transform_0, window_bounds = array<i64: 1, 16, 128>}, {transform_indices = @transform_1, window_bounds = array<i64: 1, 16, 128>}, {transform_indices = @transform_2, window_bounds = array<i64: 1, 16, 128>}]} {
    %c0 = arith.constant 0 : index
    %c0_0 = arith.constant 0 : index
    %c0_1 = arith.constant 0 : index
    %0 = vector.load %arg3[%c0, %c0_0, %c0_1] : memref<1x16x128xf32, #tpu.memory_space<vmem>>, vector<1x16x128xf32>
    %c0_2 = arith.constant 0 : index
    %c0_3 = arith.constant 0 : index
    %c0_4 = arith.constant 0 : index
    %1 = vector.load %arg5[%c0_2, %c0_3, %c0_4] : memref<1x16x128xf32, #tpu.memory_space<vmem>>, vector<1x16x128xf32>
    tpu.vector_store %arg5[%c0_2, %c0_3, %c0_4], %0 {strides = array<i32>} : memref<1x16x128xf32, #tpu.memory_space<vmem>>, vector<1x16x128xf32>,
    return
  }
  func.func @transform_0(%arg0: i32, %arg1: i32, %arg2: memref<2xi32, #tpu.memory_space<smem>>) -> (i32, i32, i32) {
    %0 = arith.index_cast %arg0 : i32 to index
    %1 = memref.load %arg2[%0] : memref<2xi32, #tpu.memory_space<smem>>
    %c0_i32 = arith.constant 0 : i32
    %c0_i32_0 = arith.constant 0 : i32
    return %1, %arg1, %c0_i32 : i32, i32, i32
  }
  func.func @transform_1(%arg0: i32, %arg1: i32, %arg2: memref<2xi32, #tpu.memory_space<smem>>) -> (i32, i32, i32) {
    %0 = arith.index_cast %arg0 : i32 to index
    %1 = memref.load %arg2[%0] : memref<2xi32, #tpu.memory_space<smem>>
    %c0_i32 = arith.constant 0 : i32
    %c0_i32_0 = arith.constant 0 : i32
    return %1, %arg1, %c0_i32 : i32, i32, i32
  }
  func.func @transform_2(%arg0: i32, %arg1: i32, %arg2: memref<2xi32, #tpu.memory_space<smem>>) -> (i32, i32, i32) {
    %0 = arith.index_cast %arg0 : i32 to index
    %1 = memref.load %arg2[%0] : memref<2xi32, #tpu.memory_space<smem>>
    %c0_i32 = arith.constant 0 : i32
    %c0_i32_0 = arith.constant 0 : i32
    return %1, %arg1, %c0_i32 : i32, i32, i32
  }
}

</mosaic_0001>

<llo_original>
// kernel: _ego_replace_impl.1
$region0: #{_ego_replace_impl.1}
  #allocation0 [shape = 'u32[]', space=smem, size = 0x4, offset = 0x4, fixed_abs, tag = 'smem constant byte address 0x4 - core index']
  #allocation1 [shape = 'u32[144,128]{1,0:T(1,128)}', space=vmem, size = 0x12000, scoped, tag = 'internal scratch']
  #allocation2 [shape = 's32[1]{0}', space=sflag, size = 0x4, scoped, tag = 'scoped memory for _ego_replace_impl.1']
  #allocation3 [shape = 'u8[512]{0}', space=smem, size = 0x200, scoped, tag = 'prefetched SMEM operand 0']
  %s0 = inlined_call_operand.vmem [shape: s32[2], index: 0, kind: input, shape index: {}]
  %s1 = inlined_call_operand.vmem [shape: f32[5,16,128], index: 1, kind: input, shape index: {}]
  %s2 = inlined_call_operand.vmem [shape: f32[5,16,128], index: 2, kind: input, shape index: {}, may-alias: {2,3}]
  %s3 = inlined_call_operand.vmem [shape: f32[5,16,128], index: 3, kind: output, shape index: {}, may-alias: {2,3}]
  %s4 = sld [smem:[#allocation0]]
  $region41: #{_ego_replace_impl.1} parent=0
    _
  %s6 = ssub.s32 1, %s4
  %s7 = scalar_select 0, %s6, %s4
  %s8 = sshll.u32 %s0, 4
  %s9 = int_to_ptr.vmem [resolvable:$true] %s8
  %11 = dma.vmem_to_smem %s9, 16, [#allocation3], [#allocation2]
  %12 = dma.done [#allocation2], 16
  %13 = sfence
  loop: start=0, step=1, limit=4
  $region2: #{_ego_replace_impl.1} parent=0 // loop_pre_header
    _
  $region3: #{_ego_replace_impl.1} parent=0 // loop_header
    %s15 = sphi 0, %s19
    %p16 = scmp.ge.s32.totalorder %s15, 4
    %s22 = sphi 0, %s34
    %s23 = sphi 0, %s30
    %s24 = sphi 0, %s22
    %s25 = sphi 0, %s23
    %s26 = sphi 0, %s24
    %s27 = sphi 0, %s25
    %s41 = sphi 0, %s43
    %s44 = sphi 0, %s41
    %s45 = sphi 0, %s44
    %s61 = sphi 0, %s45
    %s71 = sphi 0, %s73
    %s74 = sphi 0, %s71
    %s75 = sphi 0, %s74
    %s91 = sphi 0, %s75
    %s101 = sphi 0, %s103
    %s104 = sphi 0, %s101
    %s105 = sphi 0, %s104
    %s121 = sphi 0, %s105
  $region4: #{_ego_replace_impl.1} parent=0 // loop_header_branch
    %18 = sbr.rel (%p16) target = $region8
  $region5: #{_ego_replace_impl.1} parent=0 // loop_body
    %s20 = ssub.s32 %s15, 1
    %s21 = ssub.s32 %s15, 2
    %s28 = sadd.s32 1, %s23
    %p29 = scmp.ge.s32.totalorder %s28, 1
    %s30 = scalar_select %p29, 0, %s28
    %s31 = sadd.s32 1, %s22
    %s32 = scalar_select %p29, %s31, %s22
    %p33 = scmp.ge.s32.totalorder %s32, 2
    %s34 = scalar_select %p33, 0, %s32
    %s35 = sld [smem:[#allocation3 + %s22]]
    %s36 = sld [smem:[#allocation3 + %s34]]
    %s37 = ssub.s32 %s35, %s36
    %s38 = ssub.s32 %s23, %s30
    %s39 = sor.u32 %s37, %s38
    %p40 = scmp.eq.s32.totalorder %s39, 0
    %s42 = sadd.s32 %s41, 1
    %s43 = scalar_select %p40, %s41, %s42
    %p46 = pneg %p40
    %p47 = scmp.eq.s32.totalorder %s15, 1
    %p48 = por %p46, %p47
    %p49 = scmp.ne.s32.totalorder %s41, %s44
    %p50 = scmp.eq.s32.totalorder %s15, 0
    %p51 = por %p49, %p50
    %p52 = scmp.ne.s32.totalorder %s41, %s44
    %p53 = scmp.eq.s32.totalorder %s20, 1
    %p54 = por %p52, %p53
    %p55 = scmp.ne.s32.totalorder %s44, %s45
    %p56 = scmp.eq.s32.totalorder %s20, 0
    %p57 = por %p55, %p56
    %p58 = scmp.ne.s32.totalorder %s44, %s45
    %p59 = scmp.eq.s32.totalorder %s21, 1
    %p60 = por %p58, %p59
    %p62 = scmp.ne.s32.totalorder %s45, %s61
    %p63 = scmp.eq.s32.totalorder %s21, 0
    %p64 = por %p62, %p63
    %s65 = sld [smem:[#allocation3 + %s22]]
    %s66 = sld [smem:[#allocation3 + %s34]]
    %s67 = ssub.s32 %s65, %s66
    %s68 = ssub.s32 %s23, %s30
    %s69 = sor.u32 %s67, %s68
    %p70 = scmp.eq.s32.totalorder %s69, 0
    %s72 = sadd.s32 %s71, 1
    %s73 = scalar_select %p70, %s71, %s72
    %p76 = pneg %p70
    %p77 = scmp.eq.s32.totalorder %s15, 1
    %p78 = por %p76, %p77
    %p79 = scmp.ne.s32.totalorder %s71, %s74
    %p80 = scmp.eq.s32.totalorder %s15, 0
    %p81 = por %p79, %p80
    %p82 = scmp.ne.s32.totalorder %s71, %s74
    %p83 = scmp.eq.s32.totalorder %s20, 1
    %p84 = por %p82, %p83
    %p85 = scmp.ne.s32.totalorder %s74, %s75
    %p86 = scmp.eq.s32.totalorder %s20, 0
    %p87 = por %p85, %p86
    %p88 = scmp.ne.s32.totalorder %s74, %s75
    %p89 = scmp.eq.s32.totalorder %s21, 1
    %p90 = por %p88, %p89
    %p92 = scmp.ne.s32.totalorder %s75, %s91
    %p93 = scmp.eq.s32.totalorder %s21, 0
    %p94 = por %p92, %p93
    %s95 = sld [smem:[#allocation3 + %s22]]
    %s96 = sld [smem:[#allocation3 + %s34]]
    %s97 = ssub.s32 %s95, %s96
    %s98 = ssub.s32 %s23, %s30
    %s99 = sor.u32 %s97, %s98
    %p100 = scmp.eq.s32.totalorder %s99, 0
    %s102 = sadd.s32 %s101, 1
    %s103 = scalar_select %p100, %s101, %s102
    %p106 = pneg %p100
    %p107 = scmp.eq.s32.totalorder %s15, 1
    %p108 = por %p106, %p107
    %p109 = scmp.ne.s32.totalorder %s101, %s104
    %p110 = scmp.eq.s32.totalorder %s15, 0
    %p111 = por %p109, %p110
    %p112 = scmp.ne.s32.totalorder %s101, %s104
    %p113 = scmp.eq.s32.totalorder %s20, 1
    %p114 = por %p112, %p113
    %p115 = scmp.ne.s32.totalorder %s104, %s105
    %p116 = scmp.eq.s32.totalorder %s20, 0
    %p117 = por %p115, %p116
    %p118 = scmp.ne.s32.totalorder %s104, %s105
    %p119 = scmp.eq.s32.totalorder %s21, 1
    %p120 = por %p118, %p119
    %p122 = scmp.ne.s32.totalorder %s105, %s121
    %p123 = scmp.eq.s32.totalorder %s21, 0
    %p124 = por %p122, %p123
    %p125 = scmp.le.s32.totalorder 1, %s15
    %p126 = scmp.lt.s32.totalorder %s15, 3
    %p127 = pnand %p125, %p126
    %p128 = pneg %p127
    // Predicated region
    $region9: #{_ego_replace_impl.1} parent=5 // pred_check
      _
    $region10: #{_ego_replace_impl.1} parent=5 // pred_check_branch
      %130 = sbr.rel (%p127) target = $region12
    $region11: #{_ego_replace_impl.1} parent=5 // pred_region
      %s131 = ssub.s32 %s15, 1
    $region12: #{_ego_replace_impl.1} parent=5 // pred_fallthru
      _
    %p132 = scmp.lt.s32.totalorder %s15, 2
    // Predicated region
    $region13: #{_ego_replace_impl.1} parent=5 // pred_check
      %p133 = pneg %p132
    $region14: #{_ego_replace_impl.1} parent=5 // pred_check_branch
      %135 = sbr.rel (%p133) target = $region16
    $region15: #{_ego_replace_impl.1} parent=5 // pred_region
      // Predicated region
      $region17: #{_ego_replace_impl.1} parent=15 // pred_check
        %p136 = pneg %p51
      $region18: #{_ego_replace_impl.1} parent=15 // pred_check_branch
        %138 = sbr.rel (%p136) target = $region20
      $region19: #{_ego_replace_impl.1} parent=15 // pred_region
        %s139 = sld [smem:[#allocation3 + %s22]]
        %s140 = smul.u32 2, %s23
        %p141 = scmp.lt.s32.totalorder %s139, 4
        %s142 = scalar_select %p141, %s139, 4
        %p143 = scmp.lt.s32.totalorder %s140, 1
        %s144 = scalar_select %p143, %s140, 1
        %s145 = smul.addr %s142, 2
        %s146 = sadd.s32 %s144, %s145
        %s147 = smul.addr %s146, 8
        %s148 = scalar_lea.vmem %s1, %s147
        %s149 = sld [smem:[#allocation3 + %s22]]
        %s150 = smul.u32 2, %s23
      $region20: #{_ego_replace_impl.1} parent=15 // pred_fallthru
        _
      // Predicated region
      $region21: #{_ego_replace_impl.1} parent=15 // pred_check
        %p151 = pneg %p81
      $region22: #{_ego_replace_impl.1} parent=15 // pred_check_branch
        %153 = sbr.rel (%p151) target = $region24
      $region23: #{_ego_replace_impl.1} parent=15 // pred_region
        %s154 = sld [smem:[#allocation3 + %s22]]
        %s155 = smul.u32 2, %s23
        %p156 = scmp.lt.s32.totalorder %s154, 4
        %s157 = scalar_select %p156, %s154, 4
        %p158 = scmp.lt.s32.totalorder %s155, 1
        %s159 = scalar_select %p158, %s155, 1
        %s160 = smul.addr %s157, 2
        %s161 = sadd.s32 %s159, %s160
        %s162 = smul.addr %s161, 8
        %s163 = scalar_lea.vmem %s2, %s162
        %s164 = sld [smem:[#allocation3 + %s22]]
        %s165 = smul.u32 2, %s23
      $region24: #{_ego_replace_impl.1} parent=15 // pred_fallthru
        _
    $region16: #{_ego_replace_impl.1} parent=5 // pred_fallthru
      _
    %p166 = scmp.le.s32.totalorder 1, %s15
    %p167 = scmp.lt.s32.totalorder %s15, 3
    %p168 = pnand %p166, %p167
    %p169 = pneg %p168
    // Predicated region
    $region25: #{_ego_replace_impl.1} parent=5 // pred_check
      _
    $region26: #{_ego_replace_impl.1} parent=5 // pred_check_branch
      %171 = sbr.rel (%p168) target = $region28
    $region27: #{_ego_replace_impl.1} parent=5 // pred_region
      %s172 = ssub.s32 %s15, 1
      %s173 = sld [smem:[#allocation3 + %s24]]
      %s174 = smul.u32 2, %s25
      %p175 = scmp.lt.s32.totalorder %s173, 4
      %s176 = scalar_select %p175, %s173, 4
      %p177 = scmp.lt.s32.totalorder %s174, 1
      %s178 = scalar_select %p177, %s174, 1
      %s179 = smul.addr %s176, 2
      %s180 = sadd.s32 %s178, %s179
      %s181 = smul.addr %s180, 8
      %s182 = scalar_lea.vmem %s1, %s181
      %p183 = pneg %p57
      %p184 = pneg %p54
      %s185 = sld [smem:[#allocation3 + %s24]]
      %s186 = smul.u32 2, %s25
      %p187 = scmp.lt.s32.totalorder %s185, 4
      %s188 = scalar_select %p187, %s185, 4
      %p189 = scmp.lt.s32.totalorder %s186, 1
      %s190 = scalar_select %p189, %s186, 1
      %s191 = smul.addr %s188, 2
      %s192 = sadd.s32 %s190, %s191
      %s193 = smul.addr %s192, 8
      %s194 = scalar_lea.vmem %s2, %s193
      %p195 = pneg %p87
      %p196 = pneg %p84
      %p197 = pneg %p117
      %p198 = pneg %p114
      %s199 = sld [smem:[#allocation3 + %s24]]
      %s200 = smul.u32 2, %s25
      %p201 = scmp.lt.s32.totalorder %s199, 4
      %s202 = scalar_select %p201, %s199, 4
      %p203 = scmp.lt.s32.totalorder %s200, 1
      %s204 = scalar_select %p203, %s200, 1
      %s205 = smul.addr %s202, 2
      %s206 = sadd.s32 %s204, %s205
      %s207 = smul.addr %s206, 8
      %s208 = scalar_lea.vmem %s3, %s207
      %s209 = sld [smem:[#allocation3 + %s24]]
      %s210 = smul.u32 2, %s25
      %p211 = scmp.lt.s32.totalorder %s209, 4
      %s212 = scalar_select %p211, %s209, 4
      %p213 = scmp.lt.s32.totalorder %s210, 1
      %s214 = scalar_select %p213, %s210, 1
      %s215 = smul.addr %s212, 2
      %s216 = sadd.s32 %s214, %s215
      %s217 = smul.addr %s216, 8
      %s218 = scalar_lea.vmem %s1, %s217
      %s219 = sld [smem:[#allocation3 + %s24]]
      %s220 = smul.u32 2, %s25
      %s221 = sld [smem:[#allocation3 + %s24]]
      %s222 = smul.u32 2, %s25
      %p223 = scmp.lt.s32.totalorder %s221, 4
      %s224 = scalar_select %p223, %s221, 4
      %p225 = scmp.lt.s32.totalorder %s222, 1
      %s226 = scalar_select %p225, %s222, 1
      %s227 = smul.addr %s224, 2
      %s228 = sadd.s32 %s226, %s227
      %s229 = smul.addr %s228, 8
      %s230 = scalar_lea.vmem %s2, %s229
      %s231 = sld [smem:[#allocation3 + %s24]]
      %s232 = smul.u32 2, %s25
      %s233 = sld [smem:[#allocation3 + %s24]]
      %s234 = smul.u32 2, %s25
      %p235 = scmp.lt.s32.totalorder %s233, 4
      %s236 = scalar_select %p235, %s233, 4
      %p237 = scmp.lt.s32.totalorder %s234, 1
      %s238 = scalar_select %p237, %s234, 1
      %s239 = smul.addr %s236, 2
      %s240 = sadd.s32 %s238, %s239
      %s241 = smul.addr %s240, 8
      %s242 = scalar_lea.vmem %s3, %s241
      %s243 = sld [smem:[#allocation3 + %s24]]
      %s244 = smul.u32 2, %s25
      %v245 = vld [vmem:[%s218] sm:$0xff]
      %v246 = vld [vmem:[%s218 + $0x8] sm:$0xff]
      %247 = vst [vmem:[%s242] sm:$0xff] %v245
      %248 = vst [vmem:[%s242 + $0x8] sm:$0xff] %v246
      %s249 = sld [smem:[#allocation3 + %s24]]
      %s250 = smul.u32 2, %s25
      %p251 = scmp.lt.s32.totalorder %s249, 4
      %s252 = scalar_select %p251, %s249, 4
      %p253 = scmp.lt.s32.totalorder %s250, 1
      %s254 = scalar_select %p253, %s250, 1
      %s255 = smul.addr %s252, 2
      %s256 = sadd.s32 %s254, %s255
      %s257 = smul.addr %s256, 8
      %s258 = scalar_lea.vmem %s3, %s257
      // Predicated region
      $region29: #{_ego_replace_impl.1} parent=27 // pred_check
        %p259 = pneg %p114
      $region30: #{_ego_replace_impl.1} parent=27 // pred_check_branch
        %261 = sbr.rel (%p259) target = $region32
      $region31: #{_ego_replace_impl.1} parent=27 // pred_region
        %s262 = sld [smem:[#allocation3 + %s24]]
        %s263 = smul.u32 2, %s25
      $region32: #{_ego_replace_impl.1} parent=27 // pred_fallthru
        _
    $region28: #{_ego_replace_impl.1} parent=5 // pred_fallthru
      _
    %p264 = scmp.le.s32.totalorder 2, %s15
    // Predicated region
    $region33: #{_ego_replace_impl.1} parent=5 // pred_check
      %p265 = pneg %p264
    $region34: #{_ego_replace_impl.1} parent=5 // pred_check_branch
      %267 = sbr.rel (%p265) target = $region36
    $region35: #{_ego_replace_impl.1} parent=5 // pred_region
      %s268 = ssub.s32 %s15, 2
      // Predicated region
      $region37: #{_ego_replace_impl.1} parent=35 // pred_check
        %p269 = pneg %p120
      $region38: #{_ego_replace_impl.1} parent=35 // pred_check_branch
        %271 = sbr.rel (%p269) target = $region40
      $region39: #{_ego_replace_impl.1} parent=35 // pred_region
        %s272 = sld [smem:[#allocation3 + %s26]]
        %s273 = smul.u32 2, %s27
        %p274 = scmp.lt.s32.totalorder %s272, 4
        %s275 = scalar_select %p274, %s272, 4
        %p276 = scmp.lt.s32.totalorder %s273, 1
        %s277 = scalar_select %p276, %s273, 1
        %s278 = smul.addr %s275, 2
        %s279 = sadd.s32 %s277, %s278
        %s280 = smul.addr %s279, 8
        %s281 = scalar_lea.vmem %s3, %s280
      $region40: #{_ego_replace_impl.1} parent=35 // pred_fallthru
        _
    $region36: #{_ego_replace_impl.1} parent=5 // pred_fallthru
      _
  $region6: #{_ego_replace_impl.1} parent=0 // loop_footer
    %s19 = sadd.s32 1, %s15
  $region7: #{_ego_replace_impl.1} parent=0 // loop_footer_branch
    %14 = sbr.rel target = $region3
  $region8: #{_ego_replace_impl.1} parent=0 // loop_exit
    _

</llo_original>
